<compile_context>
chip_gen: v7x
topology: tpu7x:2x2x1
jax: 0.10.0
libtpu: 0.0.40
codegen_flags: <defaults>
</compile_context>

<pallas_src>
import numpy as np
import jax
import jax.numpy as jnp
from jax.experimental import pallas as pl
from jax.experimental.pallas import tpu as pltpu


def _memory_bank_kernel(x_ref, wb_ref, bias_ref, rhs_ref, e_ref, out_ref):
    """One batch tile: logits -> masked softmax -> fused (bank|sense) readout.

    x_ref   : (Bb, D)   input reps (f32)
    wb_ref  : (D, Mp)   bank^T with biaffine w pre-folded (resident)
    bias_ref: (1, Mp)   biaffine ones-row bias + (-1e30) mask on padded columns
    rhs_ref : (Mp, Wo)  [bank[:, :D]*coeff | sense*coeff], zero padded (resident)
    e_ref   : (Bb, Mp)  softmax weights
    out_ref : (Bb, Wo)  fused o1|o2 readout
    """
    x = x_ref[...]
    # Logits on the MXU; bias adds the folded biaffine ones-row and masks the
    # padded memory columns to -1e30 so they get exactly zero softmax mass.
    e = jnp.dot(x, wb_ref[...], preferred_element_type=jnp.float32)   # (Bb, Mp)
    e = e + bias_ref[...]

    # Softmax over the memory axis (dropout is identity in eval mode).
    m = jnp.max(e, axis=-1, keepdims=True)
    ex = jnp.exp(e - m)
    s = jnp.sum(ex, axis=-1, keepdims=True)
    r = pl.reciprocal(s, approx=True)          # EUP seed ...
    r = r * (2.0 - s * r)                      # ... + one Newton step (full f32)
    p = ex * r

    e_ref[...] = p
    out_ref[...] = jnp.dot(p, rhs_ref[...], preferred_element_type=jnp.float32)


def memory_bank_forward(x, bankmem, sensemem, idx, coeff, w=None, *,
                        biaffine=True, block_b=512):
    """x: (B, D); bankmem: (N, D[+1]); sensemem: (N, C); idx: (M,) active
    indices (or None); coeff: (M, 1); w: (D+1, D+1) biaffine weight.
    Returns (o1 (B, D), o2 (B, C), e (B, M))."""
    B, D = x.shape
    C = sensemem.shape[1]

    if idx is None:
        pair_rep_dim = bankmem.shape[1] - (1 if biaffine else 0)
        return (jnp.zeros((B, pair_rep_dim), x.dtype),
                jnp.zeros((B, C), x.dtype), None)

    idx = jnp.asarray(idx)
    bank_sel = bankmem[idx].astype(jnp.float32)        # (M, D[+1])  XLA gather
    sense_sel = sensemem[idx].astype(jnp.float32)      # (M, C)
    M, Da = bank_sel.shape
    coeff = jnp.asarray(coeff, jnp.float32).reshape(M, 1)

    # ---- Fold grid-invariant work into resident operands (done once). ------
    if biaffine:
        assert w is not None and Da == D + 1
        wb = jnp.asarray(w, jnp.float32) @ bank_sel.T   # (D+1, M)
        wb_x = wb[:D]                                   # (D, M)
        wb_bias = wb[D:D + 1]                           # (1, M)  ones-row bias
        bank_out = bank_sel[:, :D]                      # dropped column skipped
    else:
        assert Da == D
        wb_x = bank_sel.T                               # (D, M)
        wb_bias = jnp.zeros((1, M), jnp.float32)
        bank_out = bank_sel

    # Fused, coeff-scaled readout RHS:  [bank*coeff | sense*coeff]   (M, D+C)
    rhs = jnp.concatenate([bank_out * coeff, sense_sel * coeff], axis=1)

    # ---- Lane-dense padding (memory axis + fused output width). ------------
    LANE = 128
    Mp = pl.cdiv(M, LANE) * LANE
    Wo = pl.cdiv(D + C, LANE) * LANE
    wb_x = jnp.pad(wb_x, ((0, 0), (0, Mp - M)))
    wb_bias = jnp.pad(wb_bias, ((0, 0), (0, Mp - M)), constant_values=-1e30)
    rhs = jnp.pad(rhs, ((0, Mp - M), (0, Wo - (D + C))))

    # ---- Batch tiling. ------------------------------------------------------
    x_in = x.astype(jnp.float32)
    Bb = min(block_b, pl.cdiv(B, 8) * 8)
    # Give a v7x megacore at least 2 grid steps when the batch is big enough.
    if B > 2 * 128 and pl.cdiv(B, Bb) < 2:
        Bb = pl.cdiv(pl.cdiv(B, 2), 8) * 8
    Bp = pl.cdiv(B, Bb) * Bb
    if Bp != B:
        x_in = jnp.pad(x_in, ((0, Bp - B), (0, 0)))

    # VMEM budget: double-buffered tiles + double-buffered residents + headroom.
    vmem_bytes = 4 * (2 * (Bb * D + Bb * Mp + Bb * Wo)
                      + 2 * (D * Mp + Mp + Mp * Wo))
    vmem_limit = max(32 << 20, min(vmem_bytes + (8 << 20), 100 << 20))

    e_pad, out_pad = pl.pallas_call(
        _memory_bank_kernel,
        out_shape=(
            jax.ShapeDtypeStruct((Bp, Mp), jnp.float32),   # e  (softmax weights)
            jax.ShapeDtypeStruct((Bp, Wo), jnp.float32),   # fused o1|o2 readout
        ),
        grid=(Bp // Bb,),
        in_specs=[
            pl.BlockSpec((Bb, D), lambda i: (i, 0)),       # x tile
            pl.BlockSpec((D, Mp), lambda i: (0, 0)),       # wb (resident)
            pl.BlockSpec((1, Mp), lambda i: (0, 0)),       # bias/mask (resident)
            pl.BlockSpec((Mp, Wo), lambda i: (0, 0)),      # fused RHS (resident)
        ],
        out_specs=(
            pl.BlockSpec((Bb, Mp), lambda i: (i, 0)),
            pl.BlockSpec((Bb, Wo), lambda i: (i, 0)),
        ),
        compiler_params=pltpu.CompilerParams(
            dimension_semantics=("parallel",),
            vmem_limit_bytes=int(vmem_limit),
        ),
    )(x_in, wb_x, wb_bias, rhs)

    e = e_pad[:B, :M]
    o1 = out_pad[:B, :D]
    o2 = out_pad[:B, D:D + C]
    return o1, o2, e


def ref_forward(x, bankmem, sensemem, idx, coeff, w, biaffine):
    """Pure-JAX reference mirroring the PyTorch forward (eval mode)."""
    bank_sel = bankmem[jnp.asarray(idx)]
    sense_sel = sensemem[jnp.asarray(idx)]
    coeff = jnp.asarray(coeff, jnp.float32).reshape(-1, 1)
    if biaffine:
        xa = jnp.concatenate([x, jnp.ones((x.shape[0], 1), x.dtype)], axis=1)
        e = (xa @ w) @ bank_sel.T
    else:
        e = x @ bank_sel.T
    p = jax.nn.softmax(e, axis=-1)
    o1 = p @ (bank_sel * coeff)
    if biaffine:
        o1 = o1[:, :-1]
    o2 = p @ (sense_sel * coeff)
    return o1, o2, p


if __name__ == "__main__":
    # Small config consistent with MemoryBank: pair_rep_dim=32, nclass=4
    # (corpus_splitting == 3), memory bank of 64 entries, 16 active, batch 8.
    B, D, C, N, M = 8, 32, 4, 64, 16

    key = jax.random.PRNGKey(0)
    kx, kb, kw, km, ki = jax.random.split(key, 5)

    x = jax.random.normal(kx, (B, D), dtype=jnp.float32)

    bank_core = jax.random.uniform(kb, (N, D), jnp.float32, -1.0, 1.0)
    bankmem = jnp.concatenate([bank_core, jnp.ones((N, 1), jnp.float32)], axis=1)
    w = jax.random.uniform(kw, (D + 1, D + 1), jnp.float32, -0.1, 0.1)

    mem_mat = jax.random.randint(km, (N,), 0, C)            # sense id per memory
    sensemem = jnp.eye(C, dtype=jnp.float32)[mem_mat]       # (N, C) one-hot

    idx = jax.random.permutation(ki, N)[:M]                 # active memory indices
    # make_idx(): coeff = 1 / (#selected memories sharing this memory's sense)
    sel_senses = np.asarray(mem_mat)[np.asarray(idx)]
    counts = np.bincount(sel_senses, minlength=C).astype(np.float32)
    coeff = jnp.asarray(1.0 / counts[sel_senses]).reshape(M, 1)

    # biaffine path
    o1, o2, e = memory_bank_forward(x, bankmem, sensemem, idx, coeff, w,
                                    biaffine=True)
    jax.block_until_ready((o1, o2, e))
    o1_r, o2_r, e_r = ref_forward(x, bankmem, sensemem, idx, coeff, w, True)
    assert np.allclose(np.asarray(e), np.asarray(e_r), atol=1e-4, rtol=1e-4)
    assert np.allclose(np.asarray(o1), np.asarray(o1_r), atol=1e-4, rtol=1e-4)
    assert np.allclose(np.asarray(o2), np.asarray(o2_r), atol=1e-4, rtol=1e-4)

    # non-biaffine path
    o1n, o2n, en = memory_bank_forward(x, bank_core, sensemem, idx, coeff,
                                       biaffine=False)
    jax.block_until_ready((o1n, o2n, en))
    o1n_r, o2n_r, en_r = ref_forward(x, bank_core, sensemem, idx, coeff, None, False)
    assert np.allclose(np.asarray(en), np.asarray(en_r), atol=1e-4, rtol=1e-4)
    assert np.allclose(np.asarray(o1n), np.asarray(o1n_r), atol=1e-4, rtol=1e-4)
    assert np.allclose(np.asarray(o2n), np.asarray(o2n_r), atol=1e-4, rtol=1e-4)

    print("KERNEL_OK")
</pallas_src>

<mosaic_0001>
module attributes {stable_mosaic.version = 11 : i64} {
  func.func @_memory_bank_kernel(%arg0: i32, %arg1: memref<8x32xf32, #tpu.memory_space<vmem>>, %arg2: memref<32x128xf32, #tpu.memory_space<vmem>>, %arg3: memref<1x128xf32, #tpu.memory_space<vmem>>, %arg4: memref<128x128xf32, #tpu.memory_space<vmem>>, %arg5: memref<8x128xf32, #tpu.memory_space<vmem>>, %arg6: memref<8x128xf32, #tpu.memory_space<vmem>>) attributes {dimension_semantics = [#tpu.dimension_semantics<parallel>], iteration_bounds = array<i64: 1>, scalar_prefetch = 0 : i64, scratch_operands = 0 : i64, tpu.core_type = #tpu.core_type<tc>, window_params = [{transform_indices = @transform_0, window_bounds = array<i64: 8, 32>}, {pipeline_mode = #tpu.pipeline_mode<synchronous>, transform_indices = @transform_1, window_bounds = array<i64: 32, 128>}, {pipeline_mode = #tpu.pipeline_mode<synchronous>, transform_indices = @transform_2, window_bounds = array<i64: 1, 128>}, {pipeline_mode = #tpu.pipeline_mode<synchronous>, transform_indices = @transform_3, window_bounds = array<i64: 128, 128>}, {transform_indices = @transform_4, window_bounds = array<i64: 8, 128>}, {transform_indices = @transform_5, window_bounds = array<i64: 8, 128>}]} {
    %c0 = arith.constant 0 : index
    %c0_0 = arith.constant 0 : index
    %0 = vector.load %arg1[%c0, %c0_0] : memref<8x32xf32, #tpu.memory_space<vmem>>, vector<8x32xf32>
    %c0_1 = arith.constant 0 : index
    %c0_2 = arith.constant 0 : index
    %1 = vector.load %arg2[%c0_1, %c0_2] : memref<32x128xf32, #tpu.memory_space<vmem>>, vector<32x128xf32>
    %cst = arith.constant dense<0.000000e+00> : vector<8x128xf32>
    %2 = tpu.matmul %0, %1, %cst {dimension_numbers = #tpu.dot_dimension_numbers<[1], [0], [0], [1], [0, 0, 1, 1], [], []>} : vector<8x32xf32>, vector<32x128xf32>, vector<8x128xf32> -> vector<8x128xf32>
    %c0_3 = arith.constant 0 : index
    %c0_4 = arith.constant 0 : index
    %3 = vector.load %arg3[%c0_3, %c0_4] : memref<1x128xf32, #tpu.memory_space<vmem>>, vector<1x128xf32>
    %4 = vector.broadcast %3 : vector<1x128xf32> to vector<8x128xf32>
    %5 = arith.addf %2, %4 : vector<8x128xf32>
    %cst_5 = arith.constant dense<0xFF800000> : vector<8xf32>
    %6 = vector.multi_reduction <maximumf>, %5, %cst_5 [1] : vector<8x128xf32> to vector<8xf32>
    %7 = vector.shape_cast %6 : vector<8xf32> to vector<8x1xf32>
    %8 = vector.broadcast %7 : vector<8x1xf32> to vector<8x128xf32>
    %9 = arith.subf %5, %8 : vector<8x128xf32>
    %10 = math.exp %9 : vector<8x128xf32>
    %cst_6 = arith.constant dense<0.000000e+00> : vector<8xf32>
    %11 = vector.multi_reduction <add>, %10, %cst_6 [1] : vector<8x128xf32> to vector<8xf32>
    %12 = vector.shape_cast %11 : vector<8xf32> to vector<8x1xf32>
    %13 = tpu.reciprocal %12 {approx = true} : vector<8x1xf32> -> vector<8x1xf32>
    %14 = arith.mulf %12, %13 : vector<8x1xf32>
    %cst_7 = arith.constant 2.000000e+00 : f32
    %15 = vector.broadcast %cst_7 : f32 to vector<8x1xf32>
    %16 = arith.subf %15, %14 : vector<8x1xf32>
    %17 = arith.mulf %13, %16 : vector<8x1xf32>
    %18 = vector.broadcast %17 : vector<8x1xf32> to vector<8x128xf32>
    %19 = arith.mulf %10, %18 : vector<8x128xf32>
    %c0_8 = arith.constant 0 : index
    %c0_9 = arith.constant 0 : index
    %20 = vector.load %arg5[%c0_8, %c0_9] : memref<8x128xf32, #tpu.memory_space<vmem>>, vector<8x128xf32>
    tpu.vector_store %arg5[%c0_8, %c0_9], %19 {strides = array<i32>} : memref<8x128xf32, #tpu.memory_space<vmem>>, vector<8x128xf32>,
    %c0_10 = arith.constant 0 : index
    %c0_11 = arith.constant 0 : index
    %21 = vector.load %arg4[%c0_10, %c0_11] : memref<128x128xf32, #tpu.memory_space<vmem>>, vector<128x128xf32>
    %cst_12 = arith.constant dense<0.000000e+00> : vector<8x128xf32>
    %22 = tpu.matmul %19, %21, %cst_12 {dimension_numbers = #tpu.dot_dimension_numbers<[1], [0], [0], [1], [0, 0, 1, 1], [], []>} : vector<8x128xf32>, vector<128x128xf32>, vector<8x128xf32> -> vector<8x128xf32>
    %c0_13 = arith.constant 0 : index
    %c0_14 = arith.constant 0 : index
    %23 = vector.load %arg6[%c0_13, %c0_14] : memref<8x128xf32, #tpu.memory_space<vmem>>, vector<8x128xf32>
    tpu.vector_store %arg6[%c0_13, %c0_14], %22 {strides = array<i32>} : memref<8x128xf32, #tpu.memory_space<vmem>>, vector<8x128xf32>,
    return
  }
  func.func @transform_0(%arg0: i32) -> (i32, i32) {
    %c0_i32 = arith.constant 0 : i32
    %c0_i32_0 = arith.constant 0 : i32
    return %arg0, %c0_i32 : i32, i32
  }
  func.func @transform_1(%arg0: i32) -> (i32, i32) {
    %c0_i32 = arith.constant 0 : i32
    %c0_i32_0 = arith.constant 0 : i32
    %c0_i32_1 = arith.constant 0 : i32
    return %c0_i32, %c0_i32_0 : i32, i32
  }
  func.func @transform_2(%arg0: i32) -> (i32, i32) {
    %c0_i32 = arith.constant 0 : i32
    %c0_i32_0 = arith.constant 0 : i32
    %c0_i32_1 = arith.constant 0 : i32
    return %c0_i32, %c0_i32_0 : i32, i32
  }
  func.func @transform_3(%arg0: i32) -> (i32, i32) {
    %c0_i32 = arith.constant 0 : i32
    %c0_i32_0 = arith.constant 0 : i32
    %c0_i32_1 = arith.constant 0 : i32
    return %c0_i32, %c0_i32_0 : i32, i32
  }
  func.func @transform_4(%arg0: i32) -> (i32, i32) {
    %c0_i32 = arith.constant 0 : i32
    %c0_i32_0 = arith.constant 0 : i32
    return %arg0, %c0_i32 : i32, i32
  }
  func.func @transform_5(%arg0: i32) -> (i32, i32) {
    %c0_i32 = arith.constant 0 : i32
    %c0_i32_0 = arith.constant 0 : i32
    return %arg0, %c0_i32 : i32, i32
  }
}

</mosaic_0001>

<llo_original>
// kernel: tpu_custom_call.1
$region0: #{tpu_custom_call.1}
  #allocation0 [shape = 'u32[]', space=smem, size = 0x4, offset = 0x4, fixed_abs, tag = 'smem constant byte address 0x4 - core index']
  #allocation1 [shape = 'u32[144,128]{1,0:T(1,128)}', space=vmem, size = 0x12000, scoped, tag = 'internal scratch']
  %s0 = inlined_call_operand.hbm [shape: f32[8,32], index: 0, kind: input, shape index: {}]
  %s1 = inlined_call_operand.hbm [shape: f32[32,128], index: 1, kind: input, shape index: {}]
  %s2 = inlined_call_operand.vmem [shape: f32[1,128], index: 2, kind: input, shape index: {}]
  %s3 = inlined_call_operand.hbm [shape: f32[128,128], index: 3, kind: input, shape index: {}]
  %s4 = inlined_call_operand.hbm [shape: f32[8,128], index: 4, kind: output, shape index: {0}]
  %s5 = inlined_call_operand.hbm [shape: f32[8,128], index: 5, kind: output, shape index: {1}]
  %6 = xla_tuple %s4, %s5
  %s7 = sld [smem:[#allocation0]]
  $region46: #{tpu_custom_call.1} parent=0
    _
  %s9 = ssub.s32 1, %s7
  %s10 = scalar_select 0, %s9, %s7
  $region1: #{tpu_custom_call.1} parent=0
    #allocation2 [shape = 'u8[4096]{0}', space=vmem, size = 0x1000, scoped, tag = 'input window, operand 0, single buffered']
    #allocation3 [shape = 's32[1]{0}', space=sflag, size = 0x4, scoped, tag = 'scoped memory for tpu_custom_call.1']
    #allocation4 [shape = 's32[1]{0}', space=sflag, size = 0x4, scoped, tag = 'scoped memory for tpu_custom_call.1']
    #allocation5 [shape = 'u8[16384]{0}', space=vmem, size = 0x4000, scoped, tag = 'input window, operand 1, single buffered']
    #allocation6 [shape = 's32[1]{0}', space=sflag, size = 0x4, scoped, tag = 'scoped memory for tpu_custom_call.1']
    #allocation7 [shape = 'u8[65536]{0}', space=vmem, size = 0x10000, scoped, tag = 'input window, operand 3, single buffered']
    #allocation8 [shape = 'u8[4096]{0}', space=vmem, size = 0x1000, scoped, tag = 'output window, operand 0, single buffered']
    #allocation9 [shape = 'u8[4096]{0}', space=vmem, size = 0x1000, scoped, tag = 'output window, operand 1, single buffered']
    #allocation10 [shape = 's32[1]{0}', space=sflag, size = 0x4, scoped, tag = 'scoped memory for tpu_custom_call.1']
    %11 = vsyncpa [#allocation3], 0
    %12 = vsyncpa [#allocation6], 0
    %13 = vsyncpa [#allocation4], 0
    %14 = vsyncpa [#allocation10], 0
    // Predicated region
    $region2: #{tpu_custom_call.1} parent=1 // pred_check
      _
    $region3: #{tpu_custom_call.1} parent=1 // pred_check_branch
      %16 = sbr.rel (0) target = $region5
    $region4: #{tpu_custom_call.1} parent=1 // pred_region
      %s18 = ssub.s32 128, 128
      %19 = vsyncadd [#allocation3], %s18
      %s21 = sshll.u32 [#allocation2], 4
      %s22 = int_to_ptr.vmem [resolvable:$true] %s21
      %24 = dma.hbm_to_vmem [thread:$0]  %s0, 128, %s22, [#allocation3]
    $region5: #{tpu_custom_call.1} parent=1 // pred_fallthru
      _
    // Predicated region
    $region6: #{tpu_custom_call.1} parent=1 // pred_check
      _
    $region7: #{tpu_custom_call.1} parent=1 // pred_check_branch
      %26 = sbr.rel (0) target = $region9
    $region8: #{tpu_custom_call.1} parent=1 // pred_region
      %s28 = ssub.s32 512, 512
      %29 = vsyncadd [#allocation6], %s28
      %s30 = sshll.u32 [#allocation5], 4
      %s31 = int_to_ptr.vmem [resolvable:$true] %s30
      %36 = dma.hbm_to_vmem [thread:$0]  %s1, 512, %s31, [#allocation6], 128, 128, 8
    $region9: #{tpu_custom_call.1} parent=1 // pred_fallthru
      _
    // Predicated region
    $region10: #{tpu_custom_call.1} parent=1 // pred_check
      _
    $region11: #{tpu_custom_call.1} parent=1 // pred_check_branch
      %38 = sbr.rel (0) target = $region13
    $region12: #{tpu_custom_call.1} parent=1 // pred_region
      _
    $region13: #{tpu_custom_call.1} parent=1 // pred_fallthru
      _
    // Predicated region
    $region14: #{tpu_custom_call.1} parent=1 // pred_check
      _
    $region15: #{tpu_custom_call.1} parent=1 // pred_check_branch
      %40 = sbr.rel (0) target = $region17
    $region16: #{tpu_custom_call.1} parent=1 // pred_region
      %s42 = ssub.s32 2048, 2048
      %43 = vsyncadd [#allocation6], %s42
      %s44 = sshll.u32 [#allocation7], 4
      %s45 = int_to_ptr.vmem [resolvable:$true] %s44
      %50 = dma.hbm_to_vmem [thread:$0]  %s3, 2048, %s45, [#allocation6], 128, 128, 8
    $region17: #{tpu_custom_call.1} parent=1 // pred_fallthru
      _
    // Predicated region
    $region18: #{tpu_custom_call.1} parent=1 // pred_check
      _
    $region19: #{tpu_custom_call.1} parent=1 // pred_check_branch
      %52 = sbr.rel (0) target = $region21
    $region20: #{tpu_custom_call.1} parent=1 // pred_region
      %53 = dma.done [#allocation3], 128
    $region21: #{tpu_custom_call.1} parent=1 // pred_fallthru
      _
    // Predicated region
    $region22: #{tpu_custom_call.1} parent=1 // pred_check
      _
    $region23: #{tpu_custom_call.1} parent=1 // pred_check_branch
      %55 = sbr.rel (0) target = $region25
    $region24: #{tpu_custom_call.1} parent=1 // pred_region
      %56 = dma.done [#allocation6], 512
    $region25: #{tpu_custom_call.1} parent=1 // pred_fallthru
      _
    // Predicated region
    $region26: #{tpu_custom_call.1} parent=1 // pred_check
      _
    $region27: #{tpu_custom_call.1} parent=1 // pred_check_branch
      %58 = sbr.rel (0) target = $region29
    $region28: #{tpu_custom_call.1} parent=1 // pred_region
      %59 = dma.done [#allocation6], 2048
    $region29: #{tpu_custom_call.1} parent=1 // pred_fallthru
      _
    %v60 = vld [vmem:[#allocation2] sm:$0xff]
    %v61 = vld [vmem:[#allocation5] sm:$0xff]
    %v62 = vld [vmem:[#allocation5 + $0x8] sm:$0xff]
    %v63 = vld [vmem:[#allocation5 + $0x10] sm:$0xff]
    %v64 = vld [vmem:[#allocation5 + $0x18] sm:$0xff]
    %v65 = vld [vmem:[%s2] sm:$0x1]
    %v67 = vlaneseq
    %v68 = vshrl.u32 %v67, 7
    %v69 = vsub.s32 0, %v68
    %v70 = vrot.slane %v65, %v69
    %vm72 = vcmask 261120
    %v74 = vsel %vm72, %v60, 0
    %76 = vmatprep.subr.mxu0 0.0
    %77 = vmatpush1.msra.mxu0 %v61
    %78 = vmatprep.subr.mxu0 0.0
    %79 = vmatpush1.msra.mxu0 %v62
    %80 = vmatprep.subr.mxu0 0.0
    %81 = vmatpush1.msra.mxu0 %v63
    %82 = vmatprep.subr.mxu0 0.0
    %83 = vmatpush1.msra.mxu0 %v64
    %84 = vmatprep.subr.mxu0 0.0
    %85 = vmatpush1.msra.mxu0 0.0
    %86 = vmatprep.subr.mxu0 0.0
    %87 = vmatpush1.msra.mxu0 0.0
    %88 = vmatprep.subr.mxu0 0.0
    %89 = vmatpush1.msra.mxu0 0.0
    %90 = vmatprep.subr.mxu0 0.0
    %91 = vmatpush1.msra.mxu0 0.0
    %92 = vmatprep.subr.mxu0 0.0
    %93 = vmatpush1.msra.mxu0 0.0
    %94 = vmatprep.subr.mxu0 0.0
    %95 = vmatpush1.msra.mxu0 0.0
    %96 = vmatprep.subr.mxu0 0.0
    %97 = vmatpush1.msra.mxu0 0.0
    %98 = vmatprep.subr.mxu0 0.0
    %99 = vmatpush1.msra.mxu0 0.0
    %100 = vmatprep.subr.mxu0 0.0
    %101 = vmatpush1.msra.mxu0 0.0
    %102 = vmatprep.subr.mxu0 0.0
    %103 = vmatpush1.msra.mxu0 0.0
    %104 = vmatprep.subr.mxu0 0.0
    %105 = vmatpush1.msra.mxu0 0.0
    %106 = vmatprep.subr.mxu0 0.0
    %107 = vmatpush1.msra.mxu0 0.0
    %108 = vmatprep.subr.mxu0 0.0
    %109 = vmatpush1.msra.mxu0 0.0
    %110 = vmatprep.subr.mxu0 0.0
    %111 = vmatpush1.msra.mxu0 0.0
    %112 = vmatprep.subr.mxu0 0.0
    %113 = vmatpush1.msra.mxu0 0.0
    %114 = vmatprep.subr.mxu0 0.0
    %115 = vmatpush1.msra.mxu0 0.0
    %116 = vmatprep.subr.mxu0 0.0
    %117 = vmatpush1.msra.mxu0 0.0
    %118 = vmatprep.subr.mxu0 0.0
    %119 = vmatpush1.msra.mxu0 0.0
    %120 = vmatprep.subr.mxu0 0.0
    %121 = vmatpush1.msra.mxu0 0.0
    %122 = vmatprep.subr.mxu0 0.0
    %123 = vmatpush1.msra.mxu0 0.0
    %124 = vmatprep.subr.mxu0 0.0
    %125 = vmatpush1.msra.mxu0 0.0
    %126 = vmatprep.subr.mxu0 0.0
    %127 = vmatpush1.msra.mxu0 0.0
    %128 = vmatprep.subr.mxu0 0.0
    %129 = vmatpush1.msra.mxu0 0.0
    %130 = vmatprep.subr.mxu0 0.0
    %131 = vmatpush1.msra.mxu0 0.0
    %132 = vmatprep.subr.mxu0 0.0
    %133 = vmatpush1.msra.mxu0 0.0
    %134 = vmatprep.subr.mxu0 0.0
    %135 = vmatpush1.msra.mxu0 0.0
    %136 = vmatprep.subr.mxu0 0.0
    %137 = vmatpush1.msra.mxu0 0.0
    %138 = vmatprep.subr.mxu0 0.0
    %139 = vmatpush1.msra.mxu0 0.0
    %140 = vmatprep.mubr.f32.mxu0 0.0
    %141 = vmatmul.mubr.f32.gmra.mrb[0].mxu0 %v74
    %v142 = vpop.f32.mrb[0].mxu0
    %v143 = vadd.f32 %v70, %v142
    %v144 = vpop.f32.mrb[0].mxu0
    %145 = vdwg.mxu0
    %146 = vmax.xlane.f32.xlu0 %v143
    %v147 = vpop.xlane.xlu0 %146
    %v148 = vsub.f32 %v143, %v147
    %v149 = vmul.f32 %v148, 1.442695
    %v150 = vpow.pop %v149
    %151 = vadd.xlane.f32.xlu0 %v150
    %v152 = vpop.xlane.xlu0 %151
    %v153 = vrcp.pop %v152
    %v154 = vmul.f32 %v152, %v153
    %v155 = vsub.f32 2.0, %v154
    %v156 = vmul.f32 %v153, %v155
    %v157 = vmul.f32 %v150, %v156
    %158 = vst [vmem:[#allocation8] sm:$0xff] %v157
    %v159 = vld [vmem:[#allocation7] sm:$0xff]
    %v160 = vld [vmem:[#allocation7 + $0x8] sm:$0xff]
    %v161 = vld [vmem:[#allocation7 + $0x10] sm:$0xff]
    %v162 = vld [vmem:[#allocation7 + $0x18] sm:$0xff]
    %v163 = vld [vmem:[#allocation7 + $0x20] sm:$0xff]
    %v164 = vld [vmem:[#allocation7 + $0x28] sm:$0xff]
    %v165 = vld [vmem:[#allocation7 + $0x30] sm:$0xff]
    %v166 = vld [vmem:[#allocation7 + $0x38] sm:$0xff]
    %v167 = vld [vmem:[#allocation7 + $0x40] sm:$0xff]
    %v168 = vld [vmem:[#allocation7 + $0x48] sm:$0xff]
    %v169 = vld [vmem:[#allocation7 + $0x50] sm:$0xff]
    %v170 = vld [vmem:[#allocation7 + $0x58] sm:$0xff]
    %v171 = vld [vmem:[#allocation7 + $0x60] sm:$0xff]
    %v172 = vld [vmem:[#allocation7 + $0x68] sm:$0xff]
    %v173 = vld [vmem:[#allocation7 + $0x70] sm:$0xff]
    %v174 = vld [vmem:[#allocation7 + $0x78] sm:$0xff]
    %175 = vmatprep.subr.mxu0 0.0
    %176 = vmatpush1.msra.mxu0 %v159
    %177 = vmatprep.subr.mxu0 0.0
    %178 = vmatpush1.msra.mxu0 %v160
    %179 = vmatprep.subr.mxu0 0.0
    %180 = vmatpush1.msra.mxu0 %v161
    %181 = vmatprep.subr.mxu0 0.0
    %182 = vmatpush1.msra.mxu0 %v162
    %183 = vmatprep.subr.mxu0 0.0
    %184 = vmatpush1.msra.mxu0 %v163
    %185 = vmatprep.subr.mxu0 0.0
    %186 = vmatpush1.msra.mxu0 %v164
    %187 = vmatprep.subr.mxu0 0.0
    %188 = vmatpush1.msra.mxu0 %v165
    %189 = vmatprep.subr.mxu0 0.0
    %190 = vmatpush1.msra.mxu0 %v166
    %191 = vmatprep.subr.mxu0 0.0
    %192 = vmatpush1.msra.mxu0 %v167
    %193 = vmatprep.subr.mxu0 0.0
    %194 = vmatpush1.msra.mxu0 %v168
    %195 = vmatprep.subr.mxu0 0.0
    %196 = vmatpush1.msra.mxu0 %v169
    %197 = vmatprep.subr.mxu0 0.0
    %198 = vmatpush1.msra.mxu0 %v170
    %199 = vmatprep.subr.mxu0 0.0
    %200 = vmatpush1.msra.mxu0 %v171
    %201 = vmatprep.subr.mxu0 0.0
    %202 = vmatpush1.msra.mxu0 %v172
    %203 = vmatprep.subr.mxu0 0.0
    %204 = vmatpush1.msra.mxu0 %v173
    %205 = vmatprep.subr.mxu0 0.0
    %206 = vmatpush1.msra.mxu0 %v174
    %207 = vmatprep.subr.mxu0 0.0
    %208 = vmatpush1.msra.mxu0 0.0
    %209 = vmatprep.subr.mxu0 0.0
    %210 = vmatpush1.msra.mxu0 0.0
    %211 = vmatprep.subr.mxu0 0.0
    %212 = vmatpush1.msra.mxu0 0.0
    %213 = vmatprep.subr.mxu0 0.0
    %214 = vmatpush1.msra.mxu0 0.0
    %215 = vmatprep.subr.mxu0 0.0
    %216 = vmatpush1.msra.mxu0 0.0
    %217 = vmatprep.subr.mxu0 0.0
    %218 = vmatpush1.msra.mxu0 0.0
    %219 = vmatprep.subr.mxu0 0.0
    %220 = vmatpush1.msra.mxu0 0.0
    %221 = vmatprep.subr.mxu0 0.0
    %222 = vmatpush1.msra.mxu0 0.0
    %223 = vmatprep.subr.mxu0 0.0
    %224 = vmatpush1.msra.mxu0 0.0
    %225 = vmatprep.subr.mxu0 0.0
    %226 = vmatpush1.msra.mxu0 0.0
    %227 = vmatprep.subr.mxu0 0.0
    %228 = vmatpush1.msra.mxu0 0.0
    %229 = vmatprep.subr.mxu0 0.0
    %230 = vmatpush1.msra.mxu0 0.0
    %231 = vmatprep.subr.mxu0 0.0
    %232 = vmatpush1.msra.mxu0 0.0
    %233 = vmatprep.subr.mxu0 0.0
    %234 = vmatpush1.msra.mxu0 0.0
    %235 = vmatprep.subr.mxu0 0.0
    %236 = vmatpush1.msra.mxu0 0.0
    %237 = vmatprep.subr.mxu0 0.0
    %238 = vmatpush1.msra.mxu0 0.0
    %239 = vmatprep.mubr.f32.mxu0 0.0
    %240 = vmatmul.mubr.f32.gmra.mrb[0].mxu0 %v157
    %v241 = vpop.f32.mrb[0].mxu0
    %v242 = vadd.f32 0.0, %v241
    %v243 = vpop.f32.mrb[0].mxu0
    %244 = vdwg.mxu0
    %245 = vst [vmem:[#allocation9] sm:$0xff] %v242
    // Predicated region
    $region30: #{tpu_custom_call.1} parent=1 // pred_check
      _
    $region31: #{tpu_custom_call.1} parent=1 // pred_check_branch
      %247 = sbr.rel (0) target = $region33
    $region32: #{tpu_custom_call.1} parent=1 // pred_region
      %s249 = ssub.s32 128, 128
      %250 = vsyncadd [#allocation4], %s249
      %s252 = sshll.u32 [#allocation8], 4
      %s253 = int_to_ptr.vmem [resolvable:$true] %s252
      %255 = dma.vmem_to_hbm [thread:$0]  %s253, 128, %s4, [#allocation4]
    $region33: #{tpu_custom_call.1} parent=1 // pred_fallthru
      _
    // Predicated region
    $region34: #{tpu_custom_call.1} parent=1 // pred_check
      _
    $region35: #{tpu_custom_call.1} parent=1 // pred_check_branch
      %257 = sbr.rel (0) target = $region37
    $region36: #{tpu_custom_call.1} parent=1 // pred_region
      %s259 = ssub.s32 128, 128
      %260 = vsyncadd [#allocation10], %s259
      %s262 = sshll.u32 [#allocation9], 4
      %s263 = int_to_ptr.vmem [resolvable:$true] %s262
      %265 = dma.vmem_to_hbm [thread:$0]  %s263, 128, %s5, [#allocation10]
    $region37: #{tpu_custom_call.1} parent=1 // pred_fallthru
      _
    // Predicated region
    $region38: #{tpu_custom_call.1} parent=1 // pred_check
      _
    $region39: #{tpu_custom_call.1} parent=1 // pred_check_branch
      %267 = sbr.rel (0) target = $region41
    $region40: #{tpu_custom_call.1} parent=1 // pred_region
      %268 = dma.done [#allocation4], 128
    $region41: #{tpu_custom_call.1} parent=1 // pred_fallthru
      _
    // Predicated region
    $region42: #{tpu_custom_call.1} parent=1 // pred_check
      _
    $region43: #{tpu_custom_call.1} parent=1 // pred_check_branch
      %270 = sbr.rel (0) target = $region45
    $region44: #{tpu_custom_call.1} parent=1 // pred_region
      %271 = dma.done [#allocation10], 128
    $region45: #{tpu_custom_call.1} parent=1 // pred_fallthru
      _
    %272 = vsyncpa [#allocation3], 1
    %273 = vsyncpa [#allocation6], 1
    %274 = vsyncpa [#allocation4], 1
    %275 = vsyncpa [#allocation10], 1

</llo_original>
